<compile_context>
chip_gen: v6e
topology: v6e:2x2x1
jax: 0.10.0
libtpu: 0.0.40
codegen_flags: <defaults>
</compile_context>

<pallas_src>
import math
from functools import partial

import jax
import jax.numpy as jnp
from jax.experimental import pallas as pl
from jax.experimental.pallas import tpu as pltpu


# ----------------------------------------------------------------------------
# Patch embedding: non-overlapping Conv2d == row-tiled matmul of flat patches.
# ----------------------------------------------------------------------------
def _patch_embed_kernel(p_ref, w_ref, b_ref, o_ref):
    acc = jnp.dot(p_ref[...], w_ref[...], preferred_element_type=jnp.float32)
    o_ref[...] = (acc + b_ref[...]).astype(o_ref.dtype)


def _pick_row_tile(m):
    for t in (512, 256, 128, 64, 32, 16, 8):
        if m % t == 0:
            return t
    return m


def patch_embed(patches, w, b):
    # patches: (M, P)   w: (P, D) bf16   b: (1, D) f32   -> (M, D) f32
    patches = patches.astype(jnp.bfloat16)
    M, P = patches.shape
    D = w.shape[1]
    tm = _pick_row_tile(M)
    return pl.pallas_call(
        _patch_embed_kernel,
        out_shape=jax.ShapeDtypeStruct((M, D), jnp.float32),
        grid=(M // tm,),
        in_specs=[
            pl.BlockSpec((tm, P), lambda i: (i, 0)),
            pl.BlockSpec((P, D), lambda i: (0, 0)),
            pl.BlockSpec((1, D), lambda i: (0, 0)),
        ],
        out_specs=pl.BlockSpec((tm, D), lambda i: (i, 0)),
        compiler_params=pltpu.CompilerParams(
            dimension_semantics=("parallel",)),
    )(patches, w, b)


# ----------------------------------------------------------------------------
# Fused (cloned, original) transformer encoder block pair.
# ----------------------------------------------------------------------------
def _layernorm(x, g, b, eps=1e-6):
    # pytorch_pretrained_vit Block uses nn.LayerNorm(dim, eps=1e-6).
    mu = jnp.mean(x, axis=-1, keepdims=True)
    var = jnp.mean(jnp.square(x - mu), axis=-1, keepdims=True)
    return (x - mu) * jax.lax.rsqrt(var + eps) * g + b


def _gelu_tanh(x):
    # tanh-form GELU (tanh runs on the EUP). F.gelu is the exact-erf form;
    # difference is ~1e-3 absolute. Input kept in f32.
    # TODO(synk): swap back to exact erf GELU if bit-level parity is required.
    c = math.sqrt(2.0 / math.pi)
    return 0.5 * x * (1.0 + jnp.tanh(c * (x + 0.044715 * x * x * x)))


def _vit_block_pair_kernel(num_heads, seq_real, x_ref,
                           ln1g, ln1b, wqkv, bqkv, wo, bo,
                           ln2g, ln2b, w1, b1, w2, b2, o_ref):
    x = x_ref[0].astype(jnp.float32)             # (S, D) residual stream in f32
    S, D = x.shape
    hd = D // num_heads
    scale = 1.0 / math.sqrt(hd)

    # --- multi-headed self attention (pre-norm) ---
    h = _layernorm(x, ln1g[0], ln1b[0])
    qkv = (jnp.dot(h.astype(jnp.bfloat16), wqkv[0],
                   preferred_element_type=jnp.float32) + bqkv[0])
    qb = (qkv[:, 0:D] * scale).astype(jnp.bfloat16)   # fold 1/sqrt(hd) into q
    kb = qkv[:, D:2 * D].astype(jnp.bfloat16)
    vb = qkv[:, 2 * D:3 * D].astype(jnp.bfloat16)

    # Mask padded key columns (sequence is padded up to a multiple of 8).
    key_ids = jax.lax.broadcasted_iota(jnp.int32, (S, S), 1)
    neg = jnp.where(key_ids < seq_real, 0.0, -1e30).astype(jnp.float32)

    acc = jnp.zeros((S, D), jnp.float32)
    for hh in range(num_heads):
        sl = slice(hh * hd, (hh + 1) * hd)
        s = jax.lax.dot_general(qb[:, sl], kb[:, sl],
                                (((1,), (1,)), ((), ())),
                                preferred_element_type=jnp.float32) + neg
        m = jnp.max(s, axis=-1, keepdims=True)
        e = jnp.exp(s - m)
        p = e * pl.reciprocal(jnp.sum(e, axis=-1, keepdims=True), approx=True)
        ctx = jnp.dot(p.astype(jnp.bfloat16), vb[:, sl],
                      preferred_element_type=jnp.float32)          # (S, hd)
        # Fold the output projection into the head loop: no scratch buffer,
        # no lane-offset masked stores, identical math to (concat heads) @ Wo.
        acc = acc + jnp.dot(ctx.astype(jnp.bfloat16), wo[0, sl, :],
                            preferred_element_type=jnp.float32)
    # TODO(synk): attention / residual dropout are identity in eval mode.
    x = x + acc + bo[0]

    # --- position-wise feed forward ---
    h2 = _layernorm(x, ln2g[0], ln2b[0])
    ff = (jnp.dot(h2.astype(jnp.bfloat16), w1[0],
                  preferred_element_type=jnp.float32) + b1[0])
    ff = _gelu_tanh(ff)
    y = (jnp.dot(ff.astype(jnp.bfloat16), w2[0],
                 preferred_element_type=jnp.float32) + b2[0])

    o_ref[0, 0] = (x + y).astype(o_ref.dtype)


def vit_block_pair(x, lp, num_heads, seq_real):
    """Runs cloned block (variant 0) and original block (variant 1) on the same
    input inside one pallas_call.  Returns (2, B, S_pad, D) bf16."""
    B, S_pad, D = x.shape
    F = lp["w1"].shape[-1]

    def stacked(trailing):
        n = len(trailing)
        return pl.BlockSpec((1,) + tuple(trailing),
                            lambda v, b, n=n: (v,) + (0,) * n)

    return pl.pallas_call(
        partial(_vit_block_pair_kernel, num_heads, seq_real),
        out_shape=jax.ShapeDtypeStruct((2, B, S_pad, D), jnp.bfloat16),
        grid=(2, B),                       # variant axis outer -> weights are
        in_specs=[                          # constant-index over inner batch
            pl.BlockSpec((1, S_pad, D), lambda v, b: (b, 0, 0)),
            stacked((1, D)), stacked((1, D)),            # ln1 gamma / beta
            stacked((D, 3 * D)), stacked((1, 3 * D)),    # fused q,k,v
            stacked((D, D)), stacked((1, D)),            # attn output proj
            stacked((1, D)), stacked((1, D)),            # ln2 gamma / beta
            stacked((D, F)), stacked((1, F)),            # mlp fc1
            stacked((F, D)), stacked((1, D)),            # mlp fc2
        ],
        out_specs=pl.BlockSpec((1, 1, S_pad, D), lambda v, b: (v, b, 0, 0)),
        compiler_params=pltpu.CompilerParams(
            dimension_semantics=("parallel", "parallel"),
            # Explicit VMEM budget; raise with headroom for ViT-B-scale weights.
            vmem_limit_bytes=32 * 1024 * 1024,
        ),
    )(x, lp["ln1_g"], lp["ln1_b"], lp["wqkv"], lp["bqkv"], lp["wo"], lp["bo"],
      lp["ln2_g"], lp["ln2_b"], lp["w1"], lp["b1"], lp["w2"], lp["b2"])


# ----------------------------------------------------------------------------
# Full AnomalyViT forward.
# ----------------------------------------------------------------------------
def anomaly_vit_forward(x, params, cfg):
    B, C, H, W = x.shape
    fh = fw = cfg["patch"]
    gh, gw = H // fh, W // fw
    D = cfg["dim"]
    S = gh * gw + 1                       # +1 class token
    S_pad = ((S + 7) // 8) * 8            # sublane-dense sequence length

    # --- patch extraction (glue; channel-major flattening matches Conv2d) ---
    p = x.reshape(B, C, gh, fh, gw, fw).transpose(0, 2, 4, 1, 3, 5)
    p = p.reshape(B * gh * gw, C * fh * fw)
    emb = patch_embed(p, params["patch_w"], params["patch_b"])   # (M, D) f32
    emb = emb.reshape(B, gh * gw, D)      # == flatten(2).transpose(1, 2)

    # --- class token + 1D positional embedding (tiny elementwise glue) ---
    cls = jnp.broadcast_to(params["class_token"], (B, 1, D))
    z = jnp.concatenate([cls, emb], axis=1) + params["pos_embedding"]
    if S_pad != S:
        z = jnp.pad(z, ((0, 0), (0, S_pad - S), (0, 0)))
    z = z.astype(jnp.bfloat16)

    # --- AnomalyTransformer: cloned block sees same input as original block ---
    origin_outs, cloned_outs = [], []
    for layer in range(cfg["num_layers"]):
        pair = vit_block_pair(z, params["layers"][layer], cfg["num_heads"], S)
        cloned_outs.append(pair[0])
        origin_outs.append(pair[1])
        z = pair[1]                       # only the original block feeds forward

    origin = jnp.stack(origin_outs)[:, :, :S, :].astype(jnp.float32)
    cloned = jnp.stack(cloned_outs)[:, :, :S, :].astype(jnp.float32)
    return origin, cloned                 # (L, B, S, D) each


# ----------------------------------------------------------------------------
# Deterministic synthetic parameter initialization (shapes from __init__).
# ----------------------------------------------------------------------------
def init_params(key, cfg):
    C, fh = cfg["in_channels"], cfg["patch"]
    D, F, L = cfg["dim"], cfg["ff_dim"], cfg["num_layers"]
    seq_len = (cfg["image_size"] // fh) ** 2 + 1   # +1 class token

    def xavier(k, shape):
        lim = math.sqrt(6.0 / (shape[0] + shape[1]))
        return jax.random.uniform(k, shape, jnp.float32, -lim, lim)

    def block_params(k):
        ks = jax.random.split(k, 8)
        return {
            "ln1_g": jnp.ones((1, D), jnp.float32),
            "ln1_b": jnp.zeros((1, D), jnp.float32),
            "wqkv": jnp.concatenate(
                [xavier(ks[0], (D, D)), xavier(ks[1], (D, D)),
                 xavier(ks[2], (D, D))], axis=1),
            "bqkv": 1e-6 * jax.random.normal(ks[3], (1, 3 * D), jnp.float32),
            "wo": xavier(ks[4], (D, D)),
            "bo": 1e-6 * jax.random.normal(ks[5], (1, D), jnp.float32),
            "ln2_g": jnp.ones((1, D), jnp.float32),
            "ln2_b": jnp.zeros((1, D), jnp.float32),
            "w1": xavier(ks[6], (D, F)),
            "b1": jnp.zeros((1, F), jnp.float32),
            "w2": xavier(ks[7], (F, D)),
            "b2": jnp.zeros((1, D), jnp.float32),
        }

    mats = ("wqkv", "wo", "w1", "w2")     # large matrices stored in bf16

    def stack_pair(cloned, orig):
        out = {}
        for k in cloned:
            v = jnp.stack([cloned[k], orig[k]])          # index 0 = cloned
            out[k] = v.astype(jnp.bfloat16) if k in mats else v
        return out

    keys = jax.random.split(key, 3 + 2 * L)
    layers = [stack_pair(block_params(keys[3 + L + i]),   # cloned block i
                         block_params(keys[3 + i]))       # original block i
              for i in range(L)]
    return {
        # Conv2d weight (D, C, fh, fw) flattened to (C*fh*fw, D) for matmul.
        "patch_w": (0.02 * jax.random.normal(keys[0], (C * fh * fh, D),
                                             jnp.float32)).astype(jnp.bfloat16),
        "patch_b": 1e-6 * jax.random.normal(keys[1], (1, D), jnp.float32),
        "class_token": jnp.zeros((1, 1, D), jnp.float32),  # init: constant 0
        "pos_embedding": 0.02 * jax.random.normal(keys[2], (1, seq_len, D),
                                                  jnp.float32),
        "layers": layers,
    }


if __name__ == "__main__":
    cfg = dict(in_channels=3, image_size=16, patch=8, dim=128, ff_dim=256,
               num_heads=4, num_layers=2)
    key = jax.random.PRNGKey(0)
    pkey, xkey = jax.random.split(key)
    params = init_params(pkey, cfg)

    # input: (B, C, H, W) = (2, 3, 16, 16)
    x = jax.random.normal(xkey, (2, cfg["in_channels"],
                                 cfg["image_size"], cfg["image_size"]),
                          jnp.float32)

    origin, cloned = anomaly_vit_forward(x, params, cfg)
    jax.block_until_ready((origin, cloned))

    L = cfg["num_layers"]
    S = (cfg["image_size"] // cfg["patch"]) ** 2 + 1
    assert origin.shape == (L, 2, S, cfg["dim"]), origin.shape
    assert cloned.shape == (L, 2, S, cfg["dim"]), cloned.shape
    assert jnp.all(jnp.isfinite(origin)) and jnp.all(jnp.isfinite(cloned))
    print("KERNEL_OK")
</pallas_src>

<mosaic_0001>
module attributes {stable_mosaic.version = 11 : i64} {
  func.func @_patch_embed_kernel(%arg0: i32, %arg1: memref<8x192xbf16, #tpu.memory_space<vmem>>, %arg2: memref<192x128xbf16, #tpu.memory_space<vmem>>, %arg3: memref<1x128xf32, #tpu.memory_space<vmem>>, %arg4: memref<8x128xf32, #tpu.memory_space<vmem>>) attributes {dimension_semantics = [#tpu.dimension_semantics<parallel>], iteration_bounds = array<i64: 1>, scalar_prefetch = 0 : i64, scratch_operands = 0 : i64, tpu.core_type = #tpu.core_type<tc>, window_params = [{transform_indices = @transform_0, window_bounds = array<i64: 8, 192>}, {pipeline_mode = #tpu.pipeline_mode<synchronous>, transform_indices = @transform_1, window_bounds = array<i64: 192, 128>}, {pipeline_mode = #tpu.pipeline_mode<synchronous>, transform_indices = @transform_2, window_bounds = array<i64: 1, 128>}, {transform_indices = @transform_3, window_bounds = array<i64: 8, 128>}]} {
    %c0 = arith.constant 0 : index
    %c0_0 = arith.constant 0 : index
    %0 = vector.load %arg1[%c0, %c0_0] : memref<8x192xbf16, #tpu.memory_space<vmem>>, vector<8x192xbf16>
    %c0_1 = arith.constant 0 : index
    %c0_2 = arith.constant 0 : index
    %1 = vector.load %arg2[%c0_1, %c0_2] : memref<192x128xbf16, #tpu.memory_space<vmem>>, vector<192x128xbf16>
    %cst = arith.constant dense<0.000000e+00> : vector<8x128xf32>
    %2 = tpu.matmul %0, %1, %cst {dimension_numbers = #tpu.dot_dimension_numbers<[1], [0], [0], [1], [0, 0, 1, 1], [], []>} : vector<8x192xbf16>, vector<192x128xbf16>, vector<8x128xf32> -> vector<8x128xf32>
    %c0_3 = arith.constant 0 : index
    %c0_4 = arith.constant 0 : index
    %3 = vector.load %arg3[%c0_3, %c0_4] : memref<1x128xf32, #tpu.memory_space<vmem>>, vector<1x128xf32>
    %4 = vector.broadcast %3 : vector<1x128xf32> to vector<8x128xf32>
    %5 = arith.addf %2, %4 : vector<8x128xf32>
    %c0_5 = arith.constant 0 : index
    %c0_6 = arith.constant 0 : index
    %6 = vector.load %arg4[%c0_5, %c0_6] : memref<8x128xf32, #tpu.memory_space<vmem>>, vector<8x128xf32>
    tpu.vector_store %arg4[%c0_5, %c0_6], %5 {strides = array<i32>} : memref<8x128xf32, #tpu.memory_space<vmem>>, vector<8x128xf32>,
    return
  }
  func.func @transform_0(%arg0: i32) -> (i32, i32) {
    %c0_i32 = arith.constant 0 : i32
    %c0_i32_0 = arith.constant 0 : i32
    return %arg0, %c0_i32 : i32, i32
  }
  func.func @transform_1(%arg0: i32) -> (i32, i32) {
    %c0_i32 = arith.constant 0 : i32
    %c0_i32_0 = arith.constant 0 : i32
    %c0_i32_1 = arith.constant 0 : i32
    return %c0_i32, %c0_i32_0 : i32, i32
  }
  func.func @transform_2(%arg0: i32) -> (i32, i32) {
    %c0_i32 = arith.constant 0 : i32
    %c0_i32_0 = arith.constant 0 : i32
    %c0_i32_1 = arith.constant 0 : i32
    return %c0_i32, %c0_i32_0 : i32, i32
  }
  func.func @transform_3(%arg0: i32) -> (i32, i32) {
    %c0_i32 = arith.constant 0 : i32
    %c0_i32_0 = arith.constant 0 : i32
    return %arg0, %c0_i32 : i32, i32
  }
}

</mosaic_0001>

<llo_original>
// kernel: tpu_custom_call.1
$region0: #{tpu_custom_call.1}
  #allocation0 [shape = 'u32[]', space=smem, size = 0x4, offset = 0x4, fixed_abs, tag = 'smem constant byte address 0x4 - core index']
  #allocation1 [shape = 'u32[144,128]{1,0:T(1,128)}', space=vmem, size = 0x12000, scoped, tag = 'internal scratch']
  %s0 = inlined_call_operand.hbm [shape: bf16[8,192], index: 0, kind: input, shape index: {}]
  %s1 = inlined_call_operand.hbm [shape: bf16[192,128], index: 1, kind: input, shape index: {}]
  %s2 = inlined_call_operand.vmem [shape: f32[1,128], index: 2, kind: input, shape index: {}]
  %s3 = inlined_call_operand.hbm [shape: f32[8,128], index: 3, kind: output, shape index: {}]
  %s4 = sld [smem:[#allocation0]]
  $region30: #{tpu_custom_call.1} parent=0
    _
  %s6 = ssub.s32 1, %s4
  %s7 = scalar_select 0, %s6, %s4
  $region1: #{tpu_custom_call.1} parent=0
    #allocation2 [shape = 'u8[4096]{0}', space=vmem, size = 0x1000, scoped, tag = 'input window, operand 0, single buffered']
    #allocation3 [shape = 's32[1]{0}', space=sflag, size = 0x4, scoped, tag = 'scoped memory for tpu_custom_call.1']
    #allocation4 [shape = 's32[1]{0}', space=sflag, size = 0x4, scoped, tag = 'scoped memory for tpu_custom_call.1']
    #allocation5 [shape = 'u8[49152]{0}', space=vmem, size = 0xc000, scoped, tag = 'input window, operand 1, single buffered']
    #allocation6 [shape = 's32[1]{0}', space=sflag, size = 0x4, scoped, tag = 'scoped memory for tpu_custom_call.1']
    #allocation7 [shape = 'u8[4096]{0}', space=vmem, size = 0x1000, scoped, tag = 'output window, operand 0, single buffered']
    %8 = vsyncpa [#allocation3], 0
    %9 = vsyncpa [#allocation6], 0
    %10 = vsyncpa [#allocation4], 0
    // Predicated region
    $region2: #{tpu_custom_call.1} parent=1 // pred_check
      _
    $region3: #{tpu_custom_call.1} parent=1 // pred_check_branch
      %12 = sbr.rel (0) target = $region5
    $region4: #{tpu_custom_call.1} parent=1 // pred_region
      %s14 = ssub.s32 128, 128
      %15 = vsyncadd [#allocation3], %s14
      %s17 = sshll.u32 [#allocation2], 4
      %s18 = int_to_ptr.vmem [resolvable:$true] %s17
      %20 = dma.hbm_to_vmem [thread:$0]  %s0, 128, %s18, [#allocation3]
    $region5: #{tpu_custom_call.1} parent=1 // pred_fallthru
      _
    // Predicated region
    $region6: #{tpu_custom_call.1} parent=1 // pred_check
      _
    $region7: #{tpu_custom_call.1} parent=1 // pred_check_branch
      %22 = sbr.rel (0) target = $region9
    $region8: #{tpu_custom_call.1} parent=1 // pred_region
      %s24 = ssub.s32 1536, 1536
      %25 = vsyncadd [#allocation6], %s24
      %s26 = sshll.u32 [#allocation5], 4
      %s27 = int_to_ptr.vmem [resolvable:$true] %s26
      %32 = dma.hbm_to_vmem [thread:$0]  %s1, 1536, %s27, [#allocation6], 64, 64, 4
    $region9: #{tpu_custom_call.1} parent=1 // pred_fallthru
      _
    // Predicated region
    $region10: #{tpu_custom_call.1} parent=1 // pred_check
      _
    $region11: #{tpu_custom_call.1} parent=1 // pred_check_branch
      %34 = sbr.rel (0) target = $region13
    $region12: #{tpu_custom_call.1} parent=1 // pred_region
      _
    $region13: #{tpu_custom_call.1} parent=1 // pred_fallthru
      _
    // Predicated region
    $region14: #{tpu_custom_call.1} parent=1 // pred_check
      _
    $region15: #{tpu_custom_call.1} parent=1 // pred_check_branch
      %36 = sbr.rel (0) target = $region17
    $region16: #{tpu_custom_call.1} parent=1 // pred_region
      %37 = dma.done [#allocation3], 128
    $region17: #{tpu_custom_call.1} parent=1 // pred_fallthru
      _
    // Predicated region
    $region18: #{tpu_custom_call.1} parent=1 // pred_check
      _
    $region19: #{tpu_custom_call.1} parent=1 // pred_check_branch
      %39 = sbr.rel (0) target = $region21
    $region20: #{tpu_custom_call.1} parent=1 // pred_region
      %40 = dma.done [#allocation6], 1536
    $region21: #{tpu_custom_call.1} parent=1 // pred_fallthru
      _
    %v42 = vld [vmem:[#allocation2] sm:$0xff]
    %v43 = vld [vmem:[#allocation5] sm:$0xf]
    %v44 = vld [vmem:[#allocation5 + $0x4] sm:$0xf]
    %v45 = vld [vmem:[#allocation5 + $0x8] sm:$0xf]
    %v46 = vld [vmem:[#allocation5 + $0xc] sm:$0xf]
    %v47 = vld [vmem:[#allocation5 + $0x10] sm:$0xf]
    %v48 = vld [vmem:[#allocation5 + $0x14] sm:$0xf]
    %v49 = vld [vmem:[#allocation5 + $0x18] sm:$0xf]
    %v50 = vld [vmem:[#allocation5 + $0x1c] sm:$0xf]
    %v51 = vld [vmem:[#allocation5 + $0x20] sm:$0xf]
    %v52 = vld [vmem:[#allocation5 + $0x24] sm:$0xf]
    %v53 = vld [vmem:[#allocation5 + $0x28] sm:$0xf]
    %v54 = vld [vmem:[#allocation5 + $0x2c] sm:$0xf]
    %v55 = vld [vmem:[#allocation5 + $0x30] sm:$0xf]
    %v56 = vld [vmem:[#allocation5 + $0x34] sm:$0xf]
    %v57 = vld [vmem:[#allocation5 + $0x38] sm:$0xf]
    %v58 = vld [vmem:[#allocation5 + $0x3c] sm:$0xf]
    %v59 = vld [vmem:[#allocation5 + $0x40] sm:$0xf]
    %v60 = vld [vmem:[#allocation5 + $0x44] sm:$0xf]
    %v61 = vld [vmem:[#allocation5 + $0x48] sm:$0xf]
    %v62 = vld [vmem:[#allocation5 + $0x4c] sm:$0xf]
    %v63 = vld [vmem:[#allocation5 + $0x50] sm:$0xf]
    %v64 = vld [vmem:[#allocation5 + $0x54] sm:$0xf]
    %v65 = vld [vmem:[#allocation5 + $0x58] sm:$0xf]
    %v66 = vld [vmem:[#allocation5 + $0x5c] sm:$0xf]
    %v67 = vld [vmem:[%s2] sm:$0x1]
    %v69 = vlaneseq
    %v70 = vshrl.u32 %v69, 7
    %v71 = vsub.s32 0, %v70
    %v72 = vrot.slane %v67, %v71
    %v75 = vunpack.c.l.b16 %v42
    %v76 = vunpack.c.h.b16 %v42
    %v77 = vpack.c.b16 %v75, %v75
    %v78 = vpack.c.b16 %v76, %v76
    %v104 = vunpack.c.l.b16 %v43
    %v105 = vunpack.c.l.b16 %v44
    %v106 = vunpack.c.l.b16 %v45
    %v107 = vunpack.c.l.b16 %v46
    %v108 = vunpack.c.l.b16 %v47
    %v109 = vunpack.c.l.b16 %v48
    %v110 = vunpack.c.l.b16 %v49
    %v111 = vunpack.c.l.b16 %v50
    %v112 = vunpack.c.l.b16 %v51
    %v113 = vunpack.c.l.b16 %v52
    %v114 = vunpack.c.l.b16 %v53
    %v115 = vunpack.c.l.b16 %v54
    %v116 = vunpack.c.l.b16 %v55
    %v117 = vunpack.c.l.b16 %v56
    %v118 = vunpack.c.l.b16 %v57
    %v119 = vunpack.c.l.b16 %v58
    %v120 = vunpack.c.l.b16 %v59
    %v121 = vunpack.c.l.b16 %v60
    %v122 = vunpack.c.l.b16 %v61
    %v123 = vunpack.c.l.b16 %v62
    %v124 = vunpack.c.l.b16 %v63
    %v125 = vunpack.c.l.b16 %v64
    %v126 = vunpack.c.l.b16 %v65
    %v127 = vunpack.c.l.b16 %v66
    %v128 = vpack.c.b16 %v105, %v104
    %v129 = vpack.c.b16 %v107, %v106
    %v130 = vpack.c.b16 %v109, %v108
    %v131 = vpack.c.b16 %v111, %v110
    %v132 = vpack.c.b16 %v113, %v112
    %v133 = vpack.c.b16 %v115, %v114
    %v134 = vpack.c.b16 %v117, %v116
    %v135 = vpack.c.b16 %v119, %v118
    %v136 = vpack.c.b16 %v121, %v120
    %v137 = vpack.c.b16 %v123, %v122
    %v138 = vpack.c.b16 %v125, %v124
    %v139 = vpack.c.b16 %v127, %v126
    %vm152 = vcmask 523264
    %v154 = vsel %vm152, %v78, 0
    %156 = vmatprep.subr.bf16.mxu0 0
    %157 = vmatpush1.bf16.msra.mxu0 %v135
    %158 = vmatprep.subr.bf16.mxu0 0
    %159 = vmatpush1.bf16.msra.mxu0 %v134
    %160 = vmatprep.subr.bf16.mxu0 0
    %161 = vmatpush1.bf16.msra.mxu0 %v133
    %162 = vmatprep.subr.bf16.mxu0 0
    %163 = vmatpush1.bf16.msra.mxu0 %v132
    %164 = vmatprep.subr.bf16.mxu0 0
    %165 = vmatpush1.bf16.msra.mxu0 %v131
    %166 = vmatprep.subr.bf16.mxu0 0
    %167 = vmatpush1.bf16.msra.mxu0 %v130
    %168 = vmatprep.subr.bf16.mxu0 0
    %169 = vmatpush1.bf16.msra.mxu0 %v129
    %170 = vmatprep.subr.bf16.mxu0 0
    %171 = vmatpush1.bf16.msra.mxu0 %v128
    %172 = vmatprep.subr.bf16.mxu0 0
    %173 = vmatpush2.bf16.msra.mxu0 0
    %174 = vmatprep.subr.bf16.mxu0 0
    %175 = vmatpush2.bf16.msra.mxu0 0
    %176 = vmatprep.subr.bf16.mxu0 0
    %177 = vmatpush2.bf16.msra.mxu0 0
    %178 = vmatprep.subr.bf16.mxu0 0
    %179 = vmatpush2.bf16.msra.mxu0 0
    %180 = vmatprep.subr.bf16.mxu0 0
    %181 = vmatpush2.bf16.msra.mxu0 %v139
    %182 = vmatprep.subr.bf16.mxu0 0
    %183 = vmatpush2.bf16.msra.mxu0 %v138
    %184 = vmatprep.subr.bf16.mxu0 0
    %185 = vmatpush2.bf16.msra.mxu0 %v137
    %186 = vmatprep.subr.bf16.mxu0 0
    %187 = vmatpush2.bf16.msra.mxu0 %v136
    %188 = vmatprep.mubr.bf16.mxu0 %v154
    %189 = vmatmul.mubr.bf16.gmra.mxu0 %v77
    %v190 = vpop.f32.mrf.mxu0
    %v191 = vadd.f32 %v72, %v190
    %v192 = vpop.f32.mrf.mxu0
    %v193 = vpop.f32.mrf.mxu0
    %v194 = vpop.f32.mrf.mxu0
    %195 = vdwg.mxu0
    %196 = vst [vmem:[#allocation7] sm:$0xff] %v191
    // Predicated region
    $region22: #{tpu_custom_call.1} parent=1 // pred_check
      _
    $region23: #{tpu_custom_call.1} parent=1 // pred_check_branch
      %198 = sbr.rel (0) target = $region25
    $region24: #{tpu_custom_call.1} parent=1 // pred_region
      %s200 = ssub.s32 128, 128
      %201 = vsyncadd [#allocation4], %s200
      %s203 = sshll.u32 [#allocation7], 4
      %s204 = int_to_ptr.vmem [resolvable:$true] %s203
      %206 = dma.vmem_to_hbm [thread:$0]  %s204, 128, %s3, [#allocation4]
    $region25: #{tpu_custom_call.1} parent=1 // pred_fallthru
      _
    // Predicated region
    $region26: #{tpu_custom_call.1} parent=1 // pred_check
      _
    $region27: #{tpu_custom_call.1} parent=1 // pred_check_branch
      %208 = sbr.rel (0) target = $region29
    $region28: #{tpu_custom_call.1} parent=1 // pred_region
      %209 = dma.done [#allocation4], 128
    $region29: #{tpu_custom_call.1} parent=1 // pred_fallthru
      _
    %210 = vsyncpa [#allocation3], 1
    %211 = vsyncpa [#allocation6], 1
    %212 = vsyncpa [#allocation4], 1

</llo_original>
